<compile_context>
chip_gen: v7x
topology: tpu7x:2x2x1
jax: 0.10.0
libtpu: 0.0.40
codegen_flags: <defaults>
</compile_context>

<pallas_src>
import jax
import jax.numpy as jnp
from jax.experimental import pallas as pl
from jax.experimental.pallas import tpu as pltpu


def _attention_kernel(g_ref, x_ref, w_gx_ref, b_gx_ref, w_psi_ref, b_psi_ref,
                      out_ref):
    # Tiles are (C, tm): channels on sublanes, spatial pixels on lanes.
    g = g_ref[...].astype(jnp.float32)                    # (F_g,  tm)
    x = x_ref[...].astype(jnp.float32)                    # (F_l,  tm)

    # Fused W_g/W_x 1x1 convs (BN already folded): one matmul over the
    # stacked channel axis, single combined bias.
    gx = jnp.concatenate([g, x], axis=0)                  # (F_g+F_l, tm)
    h = jnp.dot(w_gx_ref[...], gx,
                preferred_element_type=jnp.float32) + b_gx_ref[...]
    h = jnp.maximum(h, 0.0)                               # ReLU, (F_int, tm)

    # psi = Sigmoid(BN(Conv1x1(h)))  -> lane-dense (1, tm)
    p = jnp.dot(w_psi_ref[...], h,
                preferred_element_type=jnp.float32) + b_psi_ref[...]
    p = 1.0 / (1.0 + jnp.exp(-p))                         # exp hits the EUP slot

    # out = x * psi  (psi broadcast over the channel sublanes)
    out_ref[...] = (x * p).astype(out_ref.dtype)


def _pick_spatial_tile(hw, max_tile=2048):
    """Largest lane tile: full extent if it fits, else a 128-multiple divisor."""
    if hw <= max_tile:
        return hw                      # full-extent block is always legal
    for cand in range(max_tile - max_tile % 128, 127, -128):
        if hw % cand == 0:
            return cand
    return hw                          # fallback: one block covering everything


def attention_block_pallas(g, x, params, *, max_tile=2048):
    """g: (N, F_g, H, W), x: (N, F_l, H, W)  (NCHW, like PyTorch).

    params: dict with folded, channels-first weights/biases:
        w_gx  (F_int, F_g + F_l), b_gx (F_int, 1),
        w_psi (1, F_int),         b_psi (1, 1)
    Returns x * psi with shape (N, F_l, H, W) in x.dtype.
    """
    N, F_g, H, W = g.shape
    _, F_l, _, _ = x.shape
    F_int = params["w_gx"].shape[0]
    HW = H * W
    tm = _pick_spatial_tile(HW, max_tile)

    # NCHW -> (N, C, H*W): a reshape only, no HBM transpose.
    g3 = g.reshape(N, F_g, HW)
    x3 = x.reshape(N, F_l, HW)

    w_gx = params["w_gx"].astype(jnp.float32)
    b_gx = params["b_gx"].reshape(F_int, 1).astype(jnp.float32)
    w_psi = params["w_psi"].reshape(1, F_int).astype(jnp.float32)
    b_psi = params["b_psi"].reshape(1, 1).astype(jnp.float32)

    grid = (N, HW // tm)
    const = lambda n, i: (0, 0)

    out3 = pl.pallas_call(
        _attention_kernel,
        out_shape=jax.ShapeDtypeStruct((N, F_l, HW), x.dtype),
        grid_spec=pltpu.PrefetchScalarGridSpec(
            num_scalar_prefetch=0,
            grid=grid,
            in_specs=[
                pl.BlockSpec((None, F_g, tm), lambda n, i: (n, 0, i)),  # g tile
                pl.BlockSpec((None, F_l, tm), lambda n, i: (n, 0, i)),  # x tile
                pl.BlockSpec((F_int, F_g + F_l), const),                # [wg|wx]
                pl.BlockSpec((F_int, 1), const),                        # bg+bx
                pl.BlockSpec((1, F_int), const),                        # wpsi
                pl.BlockSpec((1, 1), const),                            # bpsi
            ],
            out_specs=pl.BlockSpec((None, F_l, tm), lambda n, i: (n, 0, i)),
        ),
        compiler_params=pltpu.CompilerParams(
            # Both grid axes are independent -> shard across v7x's two TCs.
            # VMEM use is tiny (a few hundred KB) so no vmem_limit override.
            dimension_semantics=("parallel", "parallel")),
    )(g3, x3, w_gx, b_gx, w_psi, b_psi)

    return out3.reshape(N, F_l, H, W)


def _fold_bn(w, b, gamma, beta, mean, var, eps=1e-5):
    """Fold eval-mode BatchNorm into a 1x1 conv stored as (Cout, Cin)."""
    scale = gamma / jnp.sqrt(var + eps)            # (Cout,)
    return w * scale[:, None], (b - mean) * scale + beta


def make_params(key, F_g, F_l, F_int):
    """Deterministic synthetic parameters matching Attention_block.__init__.

    BatchNorm buffers are PyTorch eval-mode defaults (gamma=1, beta=0,
    running_mean=0, running_var=1); a trained module would supply its own
    buffers to _fold_bn.
    """
    k = jax.random.split(key, 6)
    # Conv weights stored channels-first as (Cout, Cin) since kernel_size=1.
    wg_raw = jax.random.normal(k[0], (F_int, F_g), jnp.float32) * 0.1
    bg_raw = jax.random.normal(k[1], (F_int,), jnp.float32) * 0.1
    wx_raw = jax.random.normal(k[2], (F_int, F_l), jnp.float32) * 0.1
    bx_raw = jax.random.normal(k[3], (F_int,), jnp.float32) * 0.1
    wpsi_raw = jax.random.normal(k[4], (1, F_int), jnp.float32) * 0.1
    bpsi_raw = jax.random.normal(k[5], (1,), jnp.float32) * 0.1

    def bn_defaults(c):
        return (jnp.ones((c,), jnp.float32), jnp.zeros((c,), jnp.float32),
                jnp.zeros((c,), jnp.float32), jnp.ones((c,), jnp.float32))

    wg, bg = _fold_bn(wg_raw, bg_raw, *bn_defaults(F_int))
    wx, bx = _fold_bn(wx_raw, bx_raw, *bn_defaults(F_int))
    wpsi, bpsi = _fold_bn(wpsi_raw, bpsi_raw, *bn_defaults(1))

    # Fuse W_g and W_x into one stacked weight / bias (applied to [g; x]).
    return {
        "w_gx": jnp.concatenate([wg, wx], axis=1),   # (F_int, F_g + F_l)
        "b_gx": (bg + bx).reshape(F_int, 1),
        "w_psi": wpsi,                               # (1, F_int)
        "b_psi": bpsi.reshape(1, 1),
    }


def attention_block_ref(g, x, params):
    """Pure-JAX reference using the same folded/fused parameters."""
    N, F_g, H, W = g.shape
    F_l = x.shape[1]
    gm = g.reshape(N, F_g, H * W).astype(jnp.float32)
    xm = x.reshape(N, F_l, H * W).astype(jnp.float32)
    gx = jnp.concatenate([gm, xm], axis=1)                       # (N, F_g+F_l, HW)
    h = jnp.einsum("oc,nch->noh", params["w_gx"], gx) + params["b_gx"][None]
    h = jnp.maximum(h, 0.0)
    p = jnp.einsum("oc,nch->noh", params["w_psi"], h) + params["b_psi"][None]
    p = 1.0 / (1.0 + jnp.exp(-p))
    out = xm * p
    return out.reshape(N, F_l, H, W)


if __name__ == "__main__":
    key = jax.random.PRNGKey(0)
    kg, kx, kp = jax.random.split(key, 3)

    # Small shapes consistent with the module: F_g = F_l = 4, F_int = 8.
    N, C, H, W = 2, 4, 16, 16
    F_int = 8

    g = jax.random.normal(kg, (N, C, H, W), jnp.float32)
    x = jax.random.normal(kx, (N, C, H, W), jnp.float32)
    params = make_params(kp, C, C, F_int)

    # f32 I/O path — tight correctness check.
    out = jax.block_until_ready(attention_block_pallas(g, x, params))
    ref = attention_block_ref(g, x, params)
    assert out.shape == (N, C, H, W)
    assert jnp.allclose(out, ref, atol=1e-5, rtol=1e-5), "f32 mismatch vs reference"

    # bf16 I/O path — halves HBM traffic; compute stays f32 inside the kernel.
    g_bf = g.astype(jnp.bfloat16)
    x_bf = x.astype(jnp.bfloat16)
    out_bf = jax.block_until_ready(attention_block_pallas(g_bf, x_bf, params))
    ref_bf = attention_block_ref(g_bf.astype(jnp.float32),
                                 x_bf.astype(jnp.float32), params)
    assert out_bf.dtype == jnp.bfloat16
    assert jnp.allclose(out_bf.astype(jnp.float32), ref_bf,
                        atol=5e-2, rtol=5e-2), "bf16 mismatch vs reference"

    print("KERNEL_OK")
</pallas_src>

<mosaic_0001>
module attributes {stable_mosaic.version = 11 : i64} {
  func.func @_attention_kernel(%arg0: i32, %arg1: i32, %arg2: memref<1x4x256xf32, #tpu.memory_space<vmem>>, %arg3: memref<1x4x256xf32, #tpu.memory_space<vmem>>, %arg4: memref<8x8xf32, #tpu.memory_space<vmem>>, %arg5: memref<8x1xf32, #tpu.memory_space<vmem>>, %arg6: memref<1x8xf32, #tpu.memory_space<vmem>>, %arg7: memref<1x1xf32, #tpu.memory_space<vmem>>, %arg8: memref<1x4x256xf32, #tpu.memory_space<vmem>>) attributes {dimension_semantics = [#tpu.dimension_semantics<parallel>, #tpu.dimension_semantics<parallel>], iteration_bounds = array<i64: 2, 1>, scalar_prefetch = 0 : i64, scratch_operands = 0 : i64, tpu.core_type = #tpu.core_type<tc>, window_params = [{transform_indices = @transform_0, window_bounds = array<i64: 1, 4, 256>}, {transform_indices = @transform_1, window_bounds = array<i64: 1, 4, 256>}, {pipeline_mode = #tpu.pipeline_mode<synchronous>, transform_indices = @transform_2, window_bounds = array<i64: 8, 8>}, {pipeline_mode = #tpu.pipeline_mode<synchronous>, transform_indices = @transform_3, window_bounds = array<i64: 8, 1>}, {pipeline_mode = #tpu.pipeline_mode<synchronous>, transform_indices = @transform_4, window_bounds = array<i64: 1, 8>}, {pipeline_mode = #tpu.pipeline_mode<synchronous>, transform_indices = @transform_5, window_bounds = array<i64: 1, 1>}, {transform_indices = @transform_6, window_bounds = array<i64: 1, 4, 256>}]} {
    %c0 = arith.constant 0 : index
    %c0_0 = arith.constant 0 : index
    %c0_1 = arith.constant 0 : index
    %0 = vector.load %arg2[%c0, %c0_0, %c0_1] : memref<1x4x256xf32, #tpu.memory_space<vmem>>, vector<1x4x256xf32>
    %1 = vector.shape_cast %0 : vector<1x4x256xf32> to vector<4x256xf32>
    %c0_2 = arith.constant 0 : index
    %c0_3 = arith.constant 0 : index
    %c0_4 = arith.constant 0 : index
    %2 = vector.load %arg3[%c0_2, %c0_3, %c0_4] : memref<1x4x256xf32, #tpu.memory_space<vmem>>, vector<1x4x256xf32>
    %3 = vector.shape_cast %2 : vector<1x4x256xf32> to vector<4x256xf32>
    %4 = tpu.concatenate %1, %3 in 0 : vector<4x256xf32>, vector<4x256xf32> -> vector<8x256xf32>
    %c0_5 = arith.constant 0 : index
    %c0_6 = arith.constant 0 : index
    %5 = vector.load %arg4[%c0_5, %c0_6] : memref<8x8xf32, #tpu.memory_space<vmem>>, vector<8x8xf32>
    %cst = arith.constant dense<0.000000e+00> : vector<8x256xf32>
    %6 = tpu.matmul %5, %4, %cst {dimension_numbers = #tpu.dot_dimension_numbers<[1], [0], [0], [1], [0, 0, 1, 1], [], []>} : vector<8x8xf32>, vector<8x256xf32>, vector<8x256xf32> -> vector<8x256xf32>
    %c0_7 = arith.constant 0 : index
    %c0_8 = arith.constant 0 : index
    %7 = vector.load %arg5[%c0_7, %c0_8] : memref<8x1xf32, #tpu.memory_space<vmem>>, vector<8x1xf32>
    %8 = vector.broadcast %7 : vector<8x1xf32> to vector<8x256xf32>
    %9 = arith.addf %6, %8 : vector<8x256xf32>
    %cst_9 = arith.constant 0.000000e+00 : f32
    %10 = vector.broadcast %cst_9 : f32 to vector<8x256xf32>
    %11 = arith.maximumf %9, %10 : vector<8x256xf32>
    %c0_10 = arith.constant 0 : index
    %c0_11 = arith.constant 0 : index
    %12 = vector.load %arg6[%c0_10, %c0_11] : memref<1x8xf32, #tpu.memory_space<vmem>>, vector<1x8xf32>
    %cst_12 = arith.constant dense<0.000000e+00> : vector<1x256xf32>
    %13 = tpu.matmul %12, %11, %cst_12 {dimension_numbers = #tpu.dot_dimension_numbers<[1], [0], [0], [1], [0, 0, 1, 1], [], []>} : vector<1x8xf32>, vector<8x256xf32>, vector<1x256xf32> -> vector<1x256xf32>
    %c0_13 = arith.constant 0 : index
    %c0_14 = arith.constant 0 : index
    %14 = vector.load %arg7[%c0_13, %c0_14] : memref<1x1xf32, #tpu.memory_space<vmem>>, vector<1x1xf32>
    %15 = vector.broadcast %14 : vector<1x1xf32> to vector<1x256xf32>
    %16 = arith.addf %13, %15 : vector<1x256xf32>
    %cst_15 = arith.constant 0.000000e+00 : f32
    %17 = vector.broadcast %cst_15 : f32 to vector<1x256xf32>
    %18 = arith.subf %17, %16 : vector<1x256xf32>
    %19 = math.exp %18 : vector<1x256xf32>
    %cst_16 = arith.constant 1.000000e+00 : f32
    %20 = vector.broadcast %cst_16 : f32 to vector<1x256xf32>
    %21 = arith.addf %20, %19 : vector<1x256xf32>
    %cst_17 = arith.constant 1.000000e+00 : f32
    %22 = vector.broadcast %cst_17 : f32 to vector<1x256xf32>
    %23 = arith.divf %22, %21 : vector<1x256xf32>
    %24 = vector.broadcast %23 : vector<1x256xf32> to vector<4x256xf32>
    %25 = arith.mulf %3, %24 : vector<4x256xf32>
    %c0_18 = arith.constant 0 : index
    %c0_19 = arith.constant 0 : index
    %c0_20 = arith.constant 0 : index
    %26 = vector.load %arg8[%c0_18, %c0_19, %c0_20] : memref<1x4x256xf32, #tpu.memory_space<vmem>>, vector<1x4x256xf32>
    %27 = vector.shape_cast %26 : vector<1x4x256xf32> to vector<4x256xf32>
    %28 = vector.shape_cast %25 : vector<4x256xf32> to vector<1x4x256xf32>
    tpu.vector_store %arg8[%c0_18, %c0_19, %c0_20], %28 {strides = array<i32>} : memref<1x4x256xf32, #tpu.memory_space<vmem>>, vector<1x4x256xf32>,
    return
  }
  func.func @transform_0(%arg0: i32, %arg1: i32) -> (i32, i32, i32) {
    %c0_i32 = arith.constant 0 : i32
    %c0_i32_0 = arith.constant 0 : i32
    return %arg0, %c0_i32, %arg1 : i32, i32, i32
  }
  func.func @transform_1(%arg0: i32, %arg1: i32) -> (i32, i32, i32) {
    %c0_i32 = arith.constant 0 : i32
    %c0_i32_0 = arith.constant 0 : i32
    return %arg0, %c0_i32, %arg1 : i32, i32, i32
  }
  func.func @transform_2(%arg0: i32, %arg1: i32) -> (i32, i32) {
    %c0_i32 = arith.constant 0 : i32
    %c0_i32_0 = arith.constant 0 : i32
    %c0_i32_1 = arith.constant 0 : i32
    return %c0_i32, %c0_i32_0 : i32, i32
  }
  func.func @transform_3(%arg0: i32, %arg1: i32) -> (i32, i32) {
    %c0_i32 = arith.constant 0 : i32
    %c0_i32_0 = arith.constant 0 : i32
    %c0_i32_1 = arith.constant 0 : i32
    return %c0_i32, %c0_i32_0 : i32, i32
  }
  func.func @transform_4(%arg0: i32, %arg1: i32) -> (i32, i32) {
    %c0_i32 = arith.constant 0 : i32
    %c0_i32_0 = arith.constant 0 : i32
    %c0_i32_1 = arith.constant 0 : i32
    return %c0_i32, %c0_i32_0 : i32, i32
  }
  func.func @transform_5(%arg0: i32, %arg1: i32) -> (i32, i32) {
    %c0_i32 = arith.constant 0 : i32
    %c0_i32_0 = arith.constant 0 : i32
    %c0_i32_1 = arith.constant 0 : i32
    return %c0_i32, %c0_i32_0 : i32, i32
  }
  func.func @transform_6(%arg0: i32, %arg1: i32) -> (i32, i32, i32) {
    %c0_i32 = arith.constant 0 : i32
    %c0_i32_0 = arith.constant 0 : i32
    return %arg0, %c0_i32, %arg1 : i32, i32, i32
  }
}

</mosaic_0001>

<llo_original>
// kernel: tpu_custom_call.1
$region0: #{tpu_custom_call.1}
  #allocation0 [shape = 'u32[]', space=smem, size = 0x4, offset = 0x4, fixed_abs, tag = 'smem constant byte address 0x4 - core index']
  #allocation1 [shape = 'u32[144,128]{1,0:T(1,128)}', space=vmem, size = 0x12000, scoped, tag = 'internal scratch']
  #allocation2 [shape = 'f32[1,1]{1,0:T(1,128)S(1)}', space=vmem, size = 0x200, scoped, tag = 'scoped memory for tpu_custom_call.1']
  %s0 = inlined_call_operand.hbm [shape: f32[2,4,256], index: 0, kind: input, shape index: {}]
  %s1 = inlined_call_operand.vmem [shape: f32[2,4,256], index: 1, kind: input, shape index: {}]
  %s2 = inlined_call_operand.hbm [shape: f32[8,8], index: 2, kind: input, shape index: {}]
  %s3 = inlined_call_operand.vmem [shape: f32[8,1], index: 3, kind: input, shape index: {}]
  %s4 = inlined_call_operand.vmem [shape: f32[1,8], index: 4, kind: input, shape index: {}]
  %s5 = inlined_call_operand.<no memory space> [shape: f32[1,1], index: 5, kind: input, shape index: {}]
  %s6 = inlined_call_operand.hbm [shape: f32[2,4,256], index: 6, kind: output, shape index: {}]
  %s7 = sld [smem:[#allocation0]]
  $region65: #{tpu_custom_call.1} parent=0
    _
  %s9 = ssub.s32 1, %s7
  %s10 = scalar_select 0, %s9, %s7
  %v11 = vstv %s5
  %12 = vst [vmem:[#allocation2] sm:$0x1] %v11
  $region1: #{tpu_custom_call.1} parent=0
    #allocation3 [shape = 'u8[8192]{0}', space=vmem, size = 0x2000, scoped, tag = 'input window, operand 0']
    #allocation4 [shape = 's32[2]{0}', space=sflag, size = 0x8, scoped, tag = 'scoped memory for tpu_custom_call.1']
    #allocation5 [shape = 's32[2]{0}', space=sflag, size = 0x8, scoped, tag = 'scoped memory for tpu_custom_call.1']
    #allocation6 [shape = 'u8[4096]{0}', space=vmem, size = 0x1000, scoped, tag = 'input window, operand 2, single buffered']
    #allocation7 [shape = 's32[1]{0}', space=sflag, size = 0x4, scoped, tag = 'scoped memory for tpu_custom_call.1']
    #allocation8 [shape = 'u8[8192]{0}', space=vmem, size = 0x2000, scoped, tag = 'output window, operand 0']
    %13 = vsyncpa [#allocation4], 0
    %s14 = scalar_lea.sflag [#allocation4], 1
    %15 = vsyncpa %s14, 0
    %16 = vsyncpa [#allocation7], 0
    %17 = vsyncpa [#allocation5], 0
    %s18 = scalar_lea.sflag [#allocation5], 1
    %19 = vsyncpa %s18, 0
    loop: start=0, step=1, limit=4
    $region2: #{tpu_custom_call.1} parent=1 // loop_pre_header
      _
    $region3: #{tpu_custom_call.1} parent=1 // loop_header
      %s21 = sphi 0, %s25
      %p22 = scmp.ge.s32.totalorder %s21, 4
      %s28 = sphi 0, %s40
      %s29 = sphi 0, %s36
      %s30 = sphi 0, %s28
      %s31 = sphi 0, %s29
      %s32 = sphi 0, %s30
      %s33 = sphi 0, %s31
      %s45 = sphi 0, %s47
      %s48 = sphi 0, %s45
      %s49 = sphi 0, %s48
      %s65 = sphi 0, %s49
      %s73 = sphi 0, %s75
      %s76 = sphi 0, %s73
      %s77 = sphi 0, %s76
      %s93 = sphi 0, %s77
      %s97 = sphi 0, %s97
      %s99 = sphi 0, %s97
      %s100 = sphi 0, %s99
      %s114 = sphi 0, %s100
      %s118 = sphi 0, %s118
      %s120 = sphi 0, %s118
      %s121 = sphi 0, %s120
      %s135 = sphi 0, %s121
      %s139 = sphi 0, %s139
      %s141 = sphi 0, %s139
      %s142 = sphi 0, %s141
      %s156 = sphi 0, %s142
      %s160 = sphi 0, %s160
      %s162 = sphi 0, %s160
      %s163 = sphi 0, %s162
      %s177 = sphi 0, %s163
      %s185 = sphi 0, %s187
      %s188 = sphi 0, %s185
      %s189 = sphi 0, %s188
      %s205 = sphi 0, %s189
    $region4: #{tpu_custom_call.1} parent=1 // loop_header_branch
      %24 = sbr.rel (%p22) target = $region8
    $region5: #{tpu_custom_call.1} parent=1 // loop_body
      %s26 = ssub.s32 %s21, 1
      %s27 = ssub.s32 %s21, 2
      %s34 = sadd.s32 1, %s29
      %p35 = scmp.ge.s32.totalorder %s34, 1
      %s36 = scalar_select %p35, 0, %s34
      %s37 = sadd.s32 1, %s28
      %s38 = scalar_select %p35, %s37, %s28
      %p39 = scmp.ge.s32.totalorder %s38, 2
      %s40 = scalar_select %p39, 0, %s38
      %s41 = ssub.s32 %s28, %s40
      %s42 = ssub.s32 %s29, %s36
      %s43 = sor.u32 %s41, %s42
      %p44 = scmp.eq.s32.totalorder %s43, 0
      %s46 = sadd.s32 %s45, 1
      %s47 = scalar_select %p44, %s45, %s46
      %p50 = pneg %p44
      %p51 = scmp.eq.s32.totalorder %s21, 1
      %p52 = por %p50, %p51
      %p53 = scmp.ne.s32.totalorder %s45, %s48
      %p54 = scmp.eq.s32.totalorder %s21, 0
      %p55 = por %p53, %p54
      %p56 = scmp.ne.s32.totalorder %s45, %s48
      %p57 = scmp.eq.s32.totalorder %s26, 1
      %p58 = por %p56, %p57
      %p59 = scmp.ne.s32.totalorder %s48, %s49
      %p60 = scmp.eq.s32.totalorder %s26, 0
      %p61 = por %p59, %p60
      %p62 = scmp.ne.s32.totalorder %s48, %s49
      %p63 = scmp.eq.s32.totalorder %s27, 1
      %p64 = por %p62, %p63
      %p66 = scmp.ne.s32.totalorder %s49, %s65
      %p67 = scmp.eq.s32.totalorder %s27, 0
      %p68 = por %p66, %p67
      %s69 = ssub.s32 %s28, %s40
      %s70 = ssub.s32 %s29, %s36
      %s71 = sor.u32 %s69, %s70
      %p72 = scmp.eq.s32.totalorder %s71, 0
      %s74 = sadd.s32 %s73, 1
      %s75 = scalar_select %p72, %s73, %s74
      %p78 = pneg %p72
      %p79 = scmp.eq.s32.totalorder %s21, 1
      %p80 = por %p78, %p79
      %p81 = scmp.ne.s32.totalorder %s73, %s76
      %p82 = scmp.eq.s32.totalorder %s21, 0
      %p83 = por %p81, %p82
      %p84 = scmp.ne.s32.totalorder %s73, %s76
      %p85 = scmp.eq.s32.totalorder %s26, 1
      %p86 = por %p84, %p85
      %p87 = scmp.ne.s32.totalorder %s76, %s77
      %p88 = scmp.eq.s32.totalorder %s26, 0
      %p89 = por %p87, %p88
      %p90 = scmp.ne.s32.totalorder %s76, %s77
      %p91 = scmp.eq.s32.totalorder %s27, 1
      %p92 = por %p90, %p91
      %p94 = scmp.ne.s32.totalorder %s77, %s93
      %p95 = scmp.eq.s32.totalorder %s27, 0
      %p96 = por %p94, %p95
      %s98 = sadd.s32 %s97, 1
      %p101 = scmp.eq.s32.totalorder %s21, 1
      %p102 = scmp.ne.s32.totalorder %s97, %s99
      %p103 = scmp.eq.s32.totalorder %s21, 0
      %p104 = por %p102, %p103
      %p105 = scmp.ne.s32.totalorder %s97, %s99
      %p106 = scmp.eq.s32.totalorder %s26, 1
      %p107 = por %p105, %p106
      %p108 = scmp.ne.s32.totalorder %s99, %s100
      %p109 = scmp.eq.s32.totalorder %s26, 0
      %p110 = por %p108, %p109
      %p111 = scmp.ne.s32.totalorder %s99, %s100
      %p112 = scmp.eq.s32.totalorder %s27, 1
      %p113 = por %p111, %p112
      %p115 = scmp.ne.s32.totalorder %s100, %s114
      %p116 = scmp.eq.s32.totalorder %s27, 0
      %p117 = por %p115, %p116
      %s119 = sadd.s32 %s118, 1
      %p122 = scmp.eq.s32.totalorder %s21, 1
      %p123 = scmp.ne.s32.totalorder %s118, %s120
      %p124 = scmp.eq.s32.totalorder %s21, 0
      %p125 = por %p123, %p124
      %p126 = scmp.ne.s32.totalorder %s118, %s120
      %p127 = scmp.eq.s32.totalorder %s26, 1
      %p128 = por %p126, %p127
      %p129 = scmp.ne.s32.totalorder %s120, %s121
      %p130 = scmp.eq.s32.totalorder %s26, 0
      %p131 = por %p129, %p130
      %p132 = scmp.ne.s32.totalorder %s120, %s121
      %p133 = scmp.eq.s32.totalorder %s27, 1
      %p134 = por %p132, %p133
      %p136 = scmp.ne.s32.totalorder %s121, %s135
      %p137 = scmp.eq.s32.totalorder %s27, 0
      %p138 = por %p136, %p137
      %s140 = sadd.s32 %s139, 1
      %p143 = scmp.eq.s32.totalorder %s21, 1
      %p144 = scmp.ne.s32.totalorder %s139, %s141
      %p145 = scmp.eq.s32.totalorder %s21, 0
      %p146 = por %p144, %p145
      %p147 = scmp.ne.s32.totalorder %s139, %s141
      %p148 = scmp.eq.s32.totalorder %s26, 1
      %p149 = por %p147, %p148
      %p150 = scmp.ne.s32.totalorder %s141, %s142
      %p151 = scmp.eq.s32.totalorder %s26, 0
      %p152 = por %p150, %p151
      %p153 = scmp.ne.s32.totalorder %s141, %s142
      %p154 = scmp.eq.s32.totalorder %s27, 1
      %p155 = por %p153, %p154
      %p157 = scmp.ne.s32.totalorder %s142, %s156
      %p158 = scmp.eq.s32.totalorder %s27, 0
      %p159 = por %p157, %p158
      %s161 = sadd.s32 %s160, 1
      %p164 = scmp.eq.s32.totalorder %s21, 1
      %p165 = scmp.ne.s32.totalorder %s160, %s162
      %p166 = scmp.eq.s32.totalorder %s21, 0
      %p167 = por %p165, %p166
      %p168 = scmp.ne.s32.totalorder %s160, %s162
      %p169 = scmp.eq.s32.totalorder %s26, 1
      %p170 = por %p168, %p169
      %p171 = scmp.ne.s32.totalorder %s162, %s163
      %p172 = scmp.eq.s32.totalorder %s26, 0
      %p173 = por %p171, %p172
      %p174 = scmp.ne.s32.totalorder %s162, %s163
      %p175 = scmp.eq.s32.totalorder %s27, 1
      %p176 = por %p174, %p175
      %p178 = scmp.ne.s32.totalorder %s163, %s177
      %p179 = scmp.eq.s32.totalorder %s27, 0
      %p180 = por %p178, %p179
      %s181 = ssub.s32 %s28, %s40
      %s182 = ssub.s32 %s29, %s36
      %s183 = sor.u32 %s181, %s182
      %p184 = scmp.eq.s32.totalorder %s183, 0
      %s186 = sadd.s32 %s185, 1
      %s187 = scalar_select %p184, %s185, %s186
      %p190 = pneg %p184
      %p191 = scmp.eq.s32.totalorder %s21, 1
      %p192 = por %p190, %p191
      %p193 = scmp.ne.s32.totalorder %s185, %s188
      %p194 = scmp.eq.s32.totalorder %s21, 0
      %p195 = por %p193, %p194
      %p196 = scmp.ne.s32.totalorder %s185, %s188
      %p197 = scmp.eq.s32.totalorder %s26, 1
      %p198 = por %p196, %p197
      %p199 = scmp.ne.s32.totalorder %s188, %s189
      %p200 = scmp.eq.s32.totalorder %s26, 0
      %p201 = por %p199, %p200
      %p202 = scmp.ne.s32.totalorder %s188, %s189
      %p203 = scmp.eq.s32.totalorder %s27, 1
      %p204 = por %p202, %p203
      %p206 = scmp.ne.s32.totalorder %s189, %s205
      %p207 = scmp.eq.s32.totalorder %s27, 0
      %p208 = por %p206, %p207
      %p209 = scmp.le.s32.totalorder 1, %s21
      %p210 = scmp.lt.s32.totalorder %s21, 3
      %p211 = pnand %p209, %p210
      %p212 = pneg %p211
      // Predicated region
      $region9: #{tpu_custom_call.1} parent=5 // pred_check
        _
      $region10: #{tpu_custom_call.1} parent=5 // pred_check_branch
        %214 = sbr.rel (%p211) target = $region12
      $region11: #{tpu_custom_call.1} parent=5 // pred_region
        %s215 = ssub.s32 %s21, 1
        // Predicated region
        $region13: #{tpu_custom_call.1} parent=11 // pred_check
          %p216 = pneg %p110
        $region14: #{tpu_custom_call.1} parent=11 // pred_check_branch
          %218 = sbr.rel (%p216) target = $region16
        $region15: #{tpu_custom_call.1} parent=11 // pred_region
          %s220 = ssub.s32 128, 128
          %221 = vsyncadd [#allocation7], %s220
          %s223 = sshll.u32 [#allocation6], 4
          %s224 = int_to_ptr.vmem [resolvable:$true] %s223
          %226 = dma.hbm_to_vmem [thread:$0]  %s2, 128, %s224, [#allocation7]
        $region16: #{tpu_custom_call.1} parent=11 // pred_fallthru
          _
        // Predicated region
        $region17: #{tpu_custom_call.1} parent=11 // pred_check
          %p227 = pneg %p131
        $region18: #{tpu_custom_call.1} parent=11 // pred_check_branch
          %229 = sbr.rel (%p227) target = $region20
        $region19: #{tpu_custom_call.1} parent=11 // pred_region
          _
        $region20: #{tpu_custom_call.1} parent=11 // pred_fallthru
          _
        // Predicated region
        $region21: #{tpu_custom_call.1} parent=11 // pred_check
          %p230 = pneg %p152
        $region22: #{tpu_custom_call.1} parent=11 // pred_check_branch
          %232 = sbr.rel (%p230) target = $region24
        $region23: #{tpu_custom_call.1} parent=11 // pred_region
          _
        $region24: #{tpu_custom_call.1} parent=11 // pred_fallthru
          _
        // Predicated region
        $region25: #{tpu_custom_call.1} parent=11 // pred_check
          %p233 = pneg %p173
        $region26: #{tpu_custom_call.1} parent=11 // pred_check_branch
          %235 = sbr.rel (%p233) target = $region28
        $region27: #{tpu_custom_call.1} parent=11 // pred_region
          _
        $region28: #{tpu_custom_call.1} parent=11 // pred_fallthru
          _
      $region12: #{tpu_custom_call.1} parent=5 // pred_fallthru
        _
      %p236 = scmp.lt.s32.totalorder %s21, 2
      // Predicated region
      $region29: #{tpu_custom_call.1} parent=5 // pred_check
        %p237 = pneg %p236
      $region30: #{tpu_custom_call.1} parent=5 // pred_check_branch
        %239 = sbr.rel (%p237) target = $region32
      $region31: #{tpu_custom_call.1} parent=5 // pred_region
        // Predicated region
        $region33: #{tpu_custom_call.1} parent=31 // pred_check
          %p240 = pneg %p55
        $region34: #{tpu_custom_call.1} parent=31 // pred_check_branch
          %242 = sbr.rel (%p240) target = $region36
        $region35: #{tpu_custom_call.1} parent=31 // pred_region
          %s243 = sand.u32 %s45, 1
          %s244 = scalar_lea.sflag [#allocation4], %s243
          %s245 = sand.u32 %s45, 1
          %s246 = smul.addr %s245, 8
          %s247 = scalar_lea.vmem [#allocation3], %s246
          %s248 = smul.u32 2, %s29
          %s250 = ssub.s32 128, 128
          %251 = vsyncadd %s244, %s250
          %s252 = smul.addr %s28, 2
          %s253 = sadd.s32 %s248, %s252
          %s254 = smul.addr %s253, 64
          %s255 = scalar_lea.hbm %s0, %s254
          %s257 = sshll.u32 %s247, 4
          %s258 = int_to_ptr.vmem [resolvable:$true] %s257
          %260 = dma.hbm_to_vmem [thread:$0]  %s255, 128, %s258, %s244
        $region36: #{tpu_custom_call.1} parent=31 // pred_fallthru
          _
        // Predicated region
        $region37: #{tpu_custom_call.1} parent=31 // pred_check
          %p261 = pneg %p83
        $region38: #{tpu_custom_call.1} parent=31 // pred_check_branch
          %263 = sbr.rel (%p261) target = $region40
        $region39: #{tpu_custom_call.1} parent=31 // pred_region
          %s264 = smul.u32 2, %s29
          %p265 = scmp.lt.s32.totalorder %s28, 1
          %s266 = scalar_select %p265, %s28, 1
          %p267 = scmp.lt.s32.totalorder %s264, 1
          %s268 = scalar_select %p267, %s264, 1
          %s269 = smul.addr %s266, 2
          %s270 = sadd.s32 %s268, %s269
          %s271 = smul.addr %s270, 4
          %s272 = scalar_lea.vmem %s1, %s271
          %s273 = smul.u32 2, %s29
        $region40: #{tpu_custom_call.1} parent=31 // pred_fallthru
          _
      $region32: #{tpu_custom_call.1} parent=5 // pred_fallthru
        _
      %p274 = scmp.le.s32.totalorder 1, %s21
      %p275 = scmp.lt.s32.totalorder %s21, 3
      %p276 = pnand %p274, %p275
      %p277 = pneg %p276
      // Predicated region
      $region41: #{tpu_custom_call.1} parent=5 // pred_check
        _
      $region42: #{tpu_custom_call.1} parent=5 // pred_check_branch
        %279 = sbr.rel (%p276) target = $region44
      $region43: #{tpu_custom_call.1} parent=5 // pred_region
        %s280 = ssub.s32 %s21, 1
        %s281 = sand.u32 %s48, 1
        %s282 = scalar_lea.sflag [#allocation4], %s281
        %s283 = sand.u32 %s48, 1
        %s284 = smul.addr %s283, 8
        %s285 = scalar_lea.vmem [#allocation3], %s284
        // Predicated region
        $region45: #{tpu_custom_call.1} parent=43 // pred_check
          %p286 = pneg %p61
        $region46: #{tpu_custom_call.1} parent=43 // pred_check_branch
          %288 = sbr.rel (%p286) target = $region48
        $region47: #{tpu_custom_call.1} parent=43 // pred_region
          %289 = dma.done %s282, 128
        $region48: #{tpu_custom_call.1} parent=43 // pred_fallthru
          _
        // Predicated region
        $region49: #{tpu_custom_call.1} parent=43 // pred_check
          %p290 = pneg %p110
        $region50: #{tpu_custom_call.1} parent=43 // pred_check_branch
          %292 = sbr.rel (%p290) target = $region52
        $region51: #{tpu_custom_call.1} parent=43 // pred_region
          %293 = dma.done [#allocation7], 128
        $region52: #{tpu_custom_call.1} parent=43 // pred_fallthru
          _
        %s294 = sand.u32 %s48, 1
        %s295 = scalar_lea.sflag [#allocation4], %s294
        %s296 = sand.u32 %s48, 1
        %s297 = smul.addr %s296, 8
        %s298 = scalar_lea.vmem [#allocation3], %s297
        %p299 = pneg %p61
        %p300 = pneg %p58
        %s301 = smul.u32 2, %s31
        %p302 = scmp.lt.s32.totalorder %s30, 1
        %s303 = scalar_select %p302, %s30, 1
        %p304 = scmp.lt.s32.totalorder %s301, 1
        %s305 = scalar_select %p304, %s301, 1
        %s306 = smul.addr %s303, 2
        %s307 = sadd.s32 %s305, %s306
        %s308 = smul.addr %s307, 4
        %s309 = scalar_lea.vmem %s1, %s308
        %p310 = pneg %p89
        %p311 = pneg %p86
        %p312 = pneg %p110
        %p313 = pneg %p107
        %p314 = pneg %p131
        %p315 = pneg %p128
        %p316 = pneg %p152
        %p317 = pneg %p149
        %p318 = pneg %p173
        %p319 = pneg %p170
        %p320 = pneg %p201
        %p321 = pneg %p198
        %s322 = sand.u32 %s188, 1
        %s323 = scalar_lea.sflag [#allocation5], %s322
        %s324 = sand.u32 %s188, 1
        %s325 = smul.addr %s324, 8
        %s326 = scalar_lea.vmem [#allocation8], %s325
        %s327 = smul.u32 2, %s31
        %s328 = smul.u32 2, %s31
        %p329 = scmp.lt.s32.totalorder %s30, 1
        %s330 = scalar_select %p329, %s30, 1
        %p331 = scmp.lt.s32.totalorder %s328, 1
        %s332 = scalar_select %p331, %s328, 1
        %s333 = smul.addr %s330, 2
        %s334 = sadd.s32 %s332, %s333
        %s335 = smul.addr %s334, 4
        %s336 = scalar_lea.vmem %s1, %s335
        %s337 = smul.u32 2, %s31
        %s338 = smul.u32 2, %s31
        %v339 = vld [vmem:[%s285] sm:$0xff]
        %v340 = vld [vmem:[%s336] sm:$0xff]
        %v342 = vcombine.high %v339, %v339
        %v345 = vcombine.low %v340, %v340
        %vm347 = vcmask 1043456
        %v348 = vsel %vm347, %v339, %v345
        %v349 = vsel %vm347, %v342, %v340
        %v350 = vld [vmem:[#allocation6] sm:$0xff]
        %v351 = vld [vmem:[%s3] sm:$0xff]
        %353 = vset.pattern.permute.xlu0 0
        %354 = vperm.xlu0 %353, %v351
        %v355 = vpop.permute.xlu0 %354
        %vm357 = vcmask 64512
        %v359 = vsel %vm357, %v350, 0
        %361 = vmatprep.subr.mxu0 %v349
        %362 = vmatpush1.msra.mxu0 %v348
        %363 = vmatprep.subr.mxu0 0.0
        %364 = vmatpush1.msra.mxu0 0.0
        %365 = vmatprep.subr.mxu0 0.0
        %366 = vmatpush1.msra.mxu0 0.0
        %367 = vmatprep.subr.mxu0 0.0
        %368 = vmatpush1.msra.mxu0 0.0
        %369 = vmatprep.subr.mxu0 0.0
        %370 = vmatpush1.msra.mxu0 0.0
        %371 = vmatprep.subr.mxu0 0.0
        %372 = vmatpush1.msra.mxu0 0.0
        %373 = vmatprep.subr.mxu0 0.0
        %374 = vmatpush1.msra.mxu0 0.0
        %375 = vmatprep.subr.mxu0 0.0
        %376 = vmatpush1.msra.mxu0 0.0
        %377 = vmatprep.subr.mxu0 0.0
        %378 = vmatpush1.msra.mxu0 0.0
        %379 = vmatprep.subr.mxu0 0.0
        %380 = vmatpush1.msra.mxu0 0.0
        %381 = vmatprep.subr.mxu0 0.0
        %382 = vmatpush1.msra.mxu0 0.0
        %383 = vmatprep.subr.mxu0 0.0
        %384 = vmatpush1.msra.mxu0 0.0
        %385 = vmatprep.subr.mxu0 0.0
        %386 = vmatpush1.msra.mxu0 0.0
        %387 = vmatprep.subr.mxu0 0.0
        %388 = vmatpush1.msra.mxu0 0.0
        %389 = vmatprep.subr.mxu0 0.0
        %390 = vmatpush1.msra.mxu0 0.0
        %391 = vmatprep.subr.mxu0 0.0
        %392 = vmatpush1.msra.mxu0 0.0
        %393 = vmatprep.subr.mxu0 0.0
        %394 = vmatpush1.msra.mxu0 0.0
        %395 = vmatprep.subr.mxu0 0.0
        %396 = vmatpush1.msra.mxu0 0.0
        %397 = vmatprep.subr.mxu0 0.0
        %398 = vmatpush1.msra.mxu0 0.0
        %399 = vmatprep.subr.mxu0 0.0
        %400 = vmatpush1.msra.mxu0 0.0
        %401 = vmatprep.subr.mxu0 0.0
        %402 = vmatpush1.msra.mxu0 0.0
        %403 = vmatprep.subr.mxu0 0.0
        %404 = vmatpush1.msra.mxu0 0.0
        %405 = vmatprep.subr.mxu0 0.0
        %406 = vmatpush1.msra.mxu0 0.0
        %407 = vmatprep.subr.mxu0 0.0
        %408 = vmatpush1.msra.mxu0 0.0
        %409 = vmatprep.subr.mxu0 0.0
        %410 = vmatpush1.msra.mxu0 0.0
        %411 = vmatprep.subr.mxu0 0.0
        %412 = vmatpush1.msra.mxu0 0.0
        %413 = vmatprep.subr.mxu0 0.0
        %414 = vmatpush1.msra.mxu0 0.0
        %415 = vmatprep.subr.mxu0 0.0
        %416 = vmatpush1.msra.mxu0 0.0
        %417 = vmatprep.subr.mxu0 0.0
        %418 = vmatpush1.msra.mxu0 0.0
        %419 = vmatprep.subr.mxu0 0.0
        %420 = vmatpush1.msra.mxu0 0.0
        %421 = vmatprep.subr.mxu0 0.0
        %422 = vmatpush1.msra.mxu0 0.0
        %423 = vmatprep.subr.mxu0 0.0
        %424 = vmatpush1.msra.mxu0 0.0
        %425 = vmatprep.mubr.f32.mxu0 0.0
        %426 = vmatmul.mubr.f32.gmra.mrb[0].mxu0 %v359
        %v427 = vpop.f32.mrb[0].mxu0
        %v428 = vadd.f32 %v355, %v427
        %v429 = vpop.f32.mrb[0].mxu0
        %v430 = vadd.f32 %v355, %v429
        %431 = vdwg.mxu0
        %v432 = vmax.f32 %v428, 0.0
        %v433 = vmax.f32 %v430, 0.0
        %v434 = vld [vmem:[%s4] sm:$0x1]
        %v435 = vld [vmem:[#allocation2] sm:$0x1]
        %437 = vset.pattern.permute.xlu0 0
        %438 = vperm.xlu0 %437, %v435
        %v439 = vpop.permute.xlu0 %438
        %v441 = vlaneseq
        %v442 = vshrl.u32 %v441, 7
        %v443 = vsub.s32 0, %v442
        %v444 = vrot.slane %v439, %v443
        %v446 = vsel %vm357, %v434, 0
        %448 = vmatprep.subr.mxu0 %v433
        %449 = vmatpush1.msra.mxu0 %v432
        %450 = vmatprep.subr.mxu0 0.0
        %451 = vmatpush1.msra.mxu0 0.0
        %452 = vmatprep.subr.mxu0 0.0
        %453 = vmatpush1.msra.mxu0 0.0
        %454 = vmatprep.subr.mxu0 0.0
        %455 = vmatpush1.msra.mxu0 0.0
        %456 = vmatprep.subr.mxu0 0.0
        %457 = vmatpush1.msra.mxu0 0.0
        %458 = vmatprep.subr.mxu0 0.0
        %459 = vmatpush1.msra.mxu0 0.0
        %460 = vmatprep.subr.mxu0 0.0
        %461 = vmatpush1.msra.mxu0 0.0
        %462 = vmatprep.subr.mxu0 0.0
        %463 = vmatpush1.msra.mxu0 0.0
        %464 = vmatprep.subr.mxu0 0.0
        %465 = vmatpush1.msra.mxu0 0.0
        %466 = vmatprep.subr.mxu0 0.0
        %467 = vmatpush1.msra.mxu0 0.0
        %468 = vmatprep.subr.mxu0 0.0
        %469 = vmatpush1.msra.mxu0 0.0
        %470 = vmatprep.subr.mxu0 0.0
        %471 = vmatpush1.msra.mxu0 0.0
        %472 = vmatprep.subr.mxu0 0.0
        %473 = vmatpush1.msra.mxu0 0.0
        %474 = vmatprep.subr.mxu0 0.0
        %475 = vmatpush1.msra.mxu0 0.0
        %476 = vmatprep.subr.mxu0 0.0
        %477 = vmatpush1.msra.mxu0 0.0
        %478 = vmatprep.subr.mxu0 0.0
        %479 = vmatpush1.msra.mxu0 0.0
        %480 = vmatprep.subr.mxu0 0.0
        %481 = vmatpush1.msra.mxu0 0.0
        %482 = vmatprep.subr.mxu0 0.0
        %483 = vmatpush1.msra.mxu0 0.0
        %484 = vmatprep.subr.mxu0 0.0
        %485 = vmatpush1.msra.mxu0 0.0
        %486 = vmatprep.subr.mxu0 0.0
        %487 = vmatpush1.msra.mxu0 0.0
        %488 = vmatprep.subr.mxu0 0.0
        %489 = vmatpush1.msra.mxu0 0.0
        %490 = vmatprep.subr.mxu0 0.0
        %491 = vmatpush1.msra.mxu0 0.0
        %492 = vmatprep.subr.mxu0 0.0
        %493 = vmatpush1.msra.mxu0 0.0
        %494 = vmatprep.subr.mxu0 0.0
        %495 = vmatpush1.msra.mxu0 0.0
        %496 = vmatprep.subr.mxu0 0.0
        %497 = vmatpush1.msra.mxu0 0.0
        %498 = vmatprep.subr.mxu0 0.0
        %499 = vmatpush1.msra.mxu0 0.0
        %500 = vmatprep.subr.mxu0 0.0
        %501 = vmatpush1.msra.mxu0 0.0
        %502 = vmatprep.subr.mxu0 0.0
        %503 = vmatpush1.msra.mxu0 0.0
        %504 = vmatprep.subr.mxu0 0.0
        %505 = vmatpush1.msra.mxu0 0.0
        %506 = vmatprep.subr.mxu0 0.0
        %507 = vmatpush1.msra.mxu0 0.0
        %508 = vmatprep.subr.mxu0 0.0
        %509 = vmatpush1.msra.mxu0 0.0
        %510 = vmatprep.subr.mxu0 0.0
        %511 = vmatpush1.msra.mxu0 0.0
        %512 = vmatprep.mubr.f32.mxu0 0.0
        %513 = vmatmul.mubr.f32.gmra.mrb[0].mxu0 %v446
        %v514 = vpop.f32.mrb[0].mxu0
        %v515 = vadd.f32 %v444, %v514
        %v516 = vpop.f32.mrb[0].mxu0
        %v517 = vadd.f32 %v444, %v516
        %518 = vdwg.mxu0
        %v519 = vsub.f32 0.0, %v515
        %v520 = vsub.f32 0.0, %v517
        %v521 = vmul.f32 %v519, 1.442695
        %v522 = vpow.pop %v521
        %v523 = vmul.f32 %v520, 1.442695
        %v524 = vpow.pop %v523
        %v525 = vadd.f32 %v522, 1.0
        %v526 = vadd.f32 %v524, 1.0
        %v527 = vrcp.pop %v525
        %v528 = vmul.f32 1.0, %v527
        %v529 = vrcp.pop %v526
        %v530 = vmul.f32 1.0, %v529
        %v531 = vlaneseq
        %v532 = vshrl.u32 %v531, 7
        %v533 = vsub.s32 0, %v532
        %v534 = vrot.slane %v528, %v533
        %v535 = vlaneseq
        %v536 = vshrl.u32 %v535, 7
        %v537 = vsub.s32 0, %v536
        %v538 = vrot.slane %v530, %v537
        %v541 = vcombine.low %v534, %v538
        %v543 = vmul.f32 %v340, %v541
        %544 = vst [vmem:[%s326] sm:$0xff] %v543
        %s545 = sand.u32 %s188, 1
        %s546 = scalar_lea.sflag [#allocation5], %s545
        %s547 = sand.u32 %s188, 1
        %s548 = smul.addr %s547, 8
        %s549 = scalar_lea.vmem [#allocation8], %s548
        // Predicated region
        $region53: #{tpu_custom_call.1} parent=43 // pred_check
          %p550 = pneg %p198
        $region54: #{tpu_custom_call.1} parent=43 // pred_check_branch
          %552 = sbr.rel (%p550) target = $region56
        $region55: #{tpu_custom_call.1} parent=43 // pred_region
          %s553 = smul.u32 2, %s31
          %s555 = ssub.s32 128, 128
          %556 = vsyncadd %s546, %s555
          %s557 = smul.addr %s30, 2
          %s558 = sadd.s32 %s553, %s557
          %s559 = smul.addr %s558, 64
          %s560 = scalar_lea.hbm %s6, %s559
          %s562 = sshll.u32 %s549, 4
          %s563 = int_to_ptr.vmem [resolvable:$true] %s562
          %565 = dma.vmem_to_hbm [thread:$0]  %s563, 128, %s560, %s546
        $region56: #{tpu_custom_call.1} parent=43 // pred_fallthru
          _
      $region44: #{tpu_custom_call.1} parent=5 // pred_fallthru
        _
      %p566 = scmp.le.s32.totalorder 2, %s21
      // Predicated region
      $region57: #{tpu_custom_call.1} parent=5 // pred_check
        %p567 = pneg %p566
      $region58: #{tpu_custom_call.1} parent=5 // pred_check_branch
        %569 = sbr.rel (%p567) target = $region60
      $region59: #{tpu_custom_call.1} parent=5 // pred_region
        %s570 = ssub.s32 %s21, 2
        // Predicated region
        $region61: #{tpu_custom_call.1} parent=59 // pred_check
          %p571 = pneg %p204
        $region62: #{tpu_custom_call.1} parent=59 // pred_check_branch
          %573 = sbr.rel (%p571) target = $region64
        $region63: #{tpu_custom_call.1} parent=59 // pred_region
          %s574 = sand.u32 %s189, 1
          %s575 = scalar_lea.sflag [#allocation5], %s574
          %s576 = sand.u32 %s189, 1
          %s577 = smul.addr %s576, 8
          %s578 = scalar_lea.vmem [#allocation8], %s577
          %579 = dma.done %s575, 128
        $region64: #{tpu_custom_call.1} parent=59 // pred_fallthru
          _
      $region60: #{tpu_custom_call.1} parent=5 // pred_fallthru
        _
    $region6: #{tpu_custom_call.1} parent=1 // loop_footer
      %s25 = sadd.s32 1, %s21
    $region7: #{tpu_custom_call.1} parent=1 // loop_footer_branch
      %20 = sbr.rel target = $region3
    $region8: #{tpu_custom_call.1} parent=1 // loop_exit
      _
    %580 = vsyncpa [#allocation4], 1
    %s581 = scalar_lea.sflag [#allocation4], 1
    %582 = vsyncpa %s581, 1
    %583 = vsyncpa [#allocation7], 1
    %584 = vsyncpa [#allocation5], 1
    %s585 = scalar_lea.sflag [#allocation5], 1
    %586 = vsyncpa %s585, 1

</llo_original>
